<compile_context>
chip_gen: v6e
topology: v6e:2x2x1
jax: 0.10.0
libtpu: 0.0.40
codegen_flags: <defaults>
</compile_context>

<pallas_src>
import functools

import jax
import jax.numpy as jnp
from jax import lax
from jax.experimental import pallas as pl
from jax.experimental.pallas import tpu as pltpu

_LANE = 128                       # vreg lane width
_MAX_TILE_ROWS = 4096             # streaming tile: 4096 x 128 px = 6 MiB f32
_MAX_TILE_FLAT = 64 * 1024        # streaming tile for non-128-aligned spatial
_CHUNK_ROWS = 1024                # in-kernel chunking for the single-pass path
_VMEM_HEADROOM = 16 * 1024 * 1024


def _round_up(a: int, m: int) -> int:
    return ((a + m - 1) // m) * m


def _round_down(a: int, m: int) -> int:
    return (a // m) * m


def _vmem_budget_bytes() -> int:
    phys = 64 * 1024 * 1024
    try:
        phys = int(pltpu.get_tpu_info().vmem_capacity_bytes)
    except Exception:
        pass
    return max(32 * 1024 * 1024, int(phys * 0.7))


def _sa_single_kernel(x_ref, o_ref, *, n_valid, chunk_rows, num_chunks, rem_rows):
    """Single-pass per-batch kernel.

    x_ref: VMEM (1, 3, rows, 128), whole image for this batch.
    o_ref: VMEM (1, 1, 1) f32 sum(k) for this batch.
    """
    aligned_chunks = (chunk_rows % 8 == 0)

    def load_chunk(off, size):
        r = x_ref[0, 0, pl.ds(off, size), :].astype(jnp.float32)
        g = x_ref[0, 1, pl.ds(off, size), :].astype(jnp.float32)
        b = x_ref[0, 2, pl.ds(off, size), :].astype(jnp.float32)
        return r, g, b

    def chunk_off(i):
        off = i * chunk_rows
        return pl.multiple_of(off, 8) if aligned_chunks else off

    zero = jnp.zeros((1, 1), jnp.float32)

    # Pass 1 (VMEM-resident): per-channel sums -> means.
    def sum_body(i, carry):
        sr, sg, sb = carry
        r, g, b = load_chunk(chunk_off(i), chunk_rows)
        return (sr + jnp.sum(r, keepdims=True),
                sg + jnp.sum(g, keepdims=True),
                sb + jnp.sum(b, keepdims=True))

    sr, sg, sb = lax.fori_loop(0, num_chunks, sum_body, (zero, zero, zero))
    if rem_rows:
        r, g, b = load_chunk(num_chunks * chunk_rows, rem_rows)
        sr = sr + jnp.sum(r, keepdims=True)
        sg = sg + jnp.sum(g, keepdims=True)
        sb = sb + jnp.sum(b, keepdims=True)

    inv_n = jnp.float32(1.0 / n_valid)
    mr = sr * inv_n      # (1, 1)
    mg = sg * inv_n
    mb = sb * inv_n

    # Pass 2 (VMEM-resident): k = sqrt(sum_c (x_c - m_c)^2), accumulate sum.
    def k_sum(off, size):
        r, g, b = load_chunk(off, size)
        dr = r - mr
        dg = g - mg
        db = b - mb
        return jnp.sum(jnp.sqrt(dr * dr + dg * dg + db * db), keepdims=True)

    def k_body(i, acc):
        return acc + k_sum(chunk_off(i), chunk_rows)

    total = lax.fori_loop(0, num_chunks, k_body, zero)
    if rem_rows:
        total = total + k_sum(num_chunks * chunk_rows, rem_rows)

    o_ref[...] = total.reshape(1, 1, 1)


def _sa_stream_kernel(means_ref, x_ref, o_ref, *, n_valid, block_pixels, needs_mask):
    """Streaming kernel: one (batch, tile) step, writes its own partial sum.

    means_ref: SMEM (bsz, 3) f32 per-batch per-channel spatial means.
    x_ref:     VMEM (1, 3, S0, S1) lane-dense image tile.
    o_ref:     VMEM (1, 1, 1, 1) f32 partial sum for this (batch, tile).
    """
    b = pl.program_id(0)
    t = pl.program_id(1)

    mr = means_ref[b, 0]
    mg = means_ref[b, 1]
    mb = means_ref[b, 2]

    r = x_ref[0, 0].astype(jnp.float32)      # (S0, S1)
    g = x_ref[0, 1].astype(jnp.float32)
    bl = x_ref[0, 2].astype(jnp.float32)

    dr = r - mr
    dg = g - mg
    db = bl - mb
    k = jnp.sqrt(dr * dr + dg * dg + db * db)

    if needs_mask:
        # Only the last tile can run past the end of the image; everything
        # else takes the cheap unmasked path.
        last_t = pl.num_programs(1) - 1

        @pl.when(t < last_t)
        def _():
            o_ref[...] = jnp.sum(k, keepdims=True).reshape(1, 1, 1, 1)

        @pl.when(t == last_t)
        def _():
            s1 = k.shape[1]
            row = lax.broadcasted_iota(jnp.int32, k.shape, 0)
            lane = lax.broadcasted_iota(jnp.int32, k.shape, 1)
            flat = t * block_pixels + row * s1 + lane
            km = jnp.where(flat < n_valid, k, 0.0)   # select: OOB garbage never summed
            o_ref[...] = jnp.sum(km, keepdims=True).reshape(1, 1, 1, 1)
    else:
        o_ref[...] = jnp.sum(k, keepdims=True).reshape(1, 1, 1, 1)


def sa_loss(x, *, _force_stream=False, _max_tile_pixels=None):
    """Pallas implementation of Sa_Loss.forward. x: (b, 3, h, w). Returns scalar f32."""
    assert x.ndim == 4 and x.shape[1] == 3, "Sa_Loss expects (b, 3, h, w)"
    bsz, _, h, w = x.shape
    n = h * w
    itemsize = jnp.dtype(x.dtype).itemsize
    budget = _vmem_budget_bytes()

    cost = pl.CostEstimate(
        flops=9 * bsz * n,
        transcendentals=bsz * n,
        bytes_accessed=bsz * 3 * n * itemsize + bsz * 3 * 4 + bsz * 4,
    )

    aligned = (n % _LANE == 0)
    rows = n // _LANE if aligned else 0

    single_pass = (aligned and not _force_stream
                   and 2 * 3 * rows * _LANE * itemsize + _VMEM_HEADROOM <= budget)

    if single_pass:
        # ---- single-pass: x read from HBM exactly once ----
        x_view = x.reshape(bsz, 3, rows, _LANE)            # free (contiguous) reshape
        chunk_rows = min(rows, _CHUNK_ROWS)
        num_chunks = rows // chunk_rows
        rem_rows = rows - num_chunks * chunk_rows
        kernel = functools.partial(
            _sa_single_kernel, n_valid=n, chunk_rows=chunk_rows,
            num_chunks=num_chunks, rem_rows=rem_rows)
        partials = pl.pallas_call(
            kernel,
            out_shape=jax.ShapeDtypeStruct((bsz, 1, 1), jnp.float32),
            grid_spec=pltpu.PrefetchScalarGridSpec(
                num_scalar_prefetch=0,
                grid=(bsz,),
                in_specs=[pl.BlockSpec((1, 3, rows, _LANE), lambda b: (b, 0, 0, 0))],
                out_specs=pl.BlockSpec((1, 1, 1), lambda b: (b, 0, 0)),
            ),
            compiler_params=pltpu.CompilerParams(
                dimension_semantics=("parallel",),
                vmem_limit_bytes=budget,
            ),
            cost_estimate=cost,
        )(x_view)
    else:
        # ---- streaming fallback: JAX means (SMEM) + tiled k-pass ----
        means = jnp.mean(x, axis=(2, 3), dtype=jnp.float32)       # (bsz, 3)

        if aligned:
            x_view = x.reshape(bsz, 3, rows, _LANE)                # free reshape, no pad
            budget_rows = _round_down(
                max(8, (budget - _VMEM_HEADROOM) // (2 * 3 * _LANE * itemsize)), 8)
            tile_rows = min(_round_up(rows, 8), _MAX_TILE_ROWS, budget_rows)
            if _max_tile_pixels is not None:
                tile_rows = min(tile_rows, max(8, _round_down(_max_tile_pixels // _LANE, 8)))
            tile_rows = max(8, _round_down(tile_rows, 8))
            grid_t = pl.cdiv(rows, tile_rows)
            block = (1, 3, tile_rows, _LANE)
            block_pixels = tile_rows * _LANE
            index_map = lambda b, t: (b, 0, t, 0)
        else:
            # Non-128-aligned pixel count: flat (1, n) spatial view; last tile is
            # allowed to be out-of-bounds and is masked in-kernel (no pad copy).
            x_view = x.reshape(bsz, 3, 1, n)                       # free reshape
            budget_flat = _round_down(
                max(_LANE, (budget - _VMEM_HEADROOM) // (2 * 3 * 8 * 4)), _LANE)
            tile_n = min(_round_up(n, _LANE), _MAX_TILE_FLAT, budget_flat)
            if _max_tile_pixels is not None:
                tile_n = min(tile_n, max(_LANE, _round_down(_max_tile_pixels, _LANE)))
            tile_n = max(_LANE, _round_down(tile_n, _LANE))
            grid_t = pl.cdiv(n, tile_n)
            block = (1, 3, 1, tile_n)
            block_pixels = tile_n
            index_map = lambda b, t: (b, 0, 0, t)

        needs_mask = (grid_t * block_pixels != n)
        kernel = functools.partial(
            _sa_stream_kernel, n_valid=n, block_pixels=block_pixels,
            needs_mask=needs_mask)
        partials = pl.pallas_call(
            kernel,
            out_shape=jax.ShapeDtypeStruct((bsz, grid_t, 1, 1), jnp.float32),
            grid_spec=pltpu.PrefetchScalarGridSpec(
                num_scalar_prefetch=0,
                grid=(bsz, grid_t),
                in_specs=[
                    pl.BlockSpec(memory_space=pltpu.MemorySpace.SMEM),   # means
                    pl.BlockSpec(block, index_map),                      # image tile
                ],
                out_specs=pl.BlockSpec((1, 1, 1, 1), lambda b, t: (b, t, 0, 0)),
            ),
            compiler_params=pltpu.CompilerParams(
                # Every (b, t) writes its own partial -> both axes parallel
                # (megacore balance on v7x even at batch 1).
                dimension_semantics=("parallel", "parallel"),
                vmem_limit_bytes=budget,
            ),
            cost_estimate=cost,
        )(means, x_view)

    return (jnp.sum(partials) / jnp.float32(bsz * n)).astype(jnp.float32)


def _sa_loss_ref(x):
    mean_rgb = jnp.mean(x, axis=(2, 3), keepdims=True)
    d = x - mean_rgb
    k = jnp.sqrt(jnp.sum(d * d, axis=1))   # (b, h, w)
    return jnp.mean(k)


if __name__ == "__main__":
    key = jax.random.PRNGKey(0)

    # (shape, dtype, kwargs):
    #  1. single-pass path (aligned, fits VMEM)
    #  2. forced streaming path, aligned, 4 row-tiles, no mask
    #  3. streaming path, non-128-aligned pixels, OOB last tile + mask
    #  4. bf16 input on the single-pass path (kernel upcasts internally)
    cases = [
        ((2, 3, 16, 16), jnp.float32, {}),
        ((2, 3, 32, 128), jnp.float32, dict(_force_stream=True, _max_tile_pixels=8 * _LANE)),
        ((2, 3, 17, 19), jnp.float32, dict(_max_tile_pixels=_LANE)),
        ((2, 3, 16, 16), jnp.bfloat16, {}),
    ]

    keys = jax.random.split(key, len(cases))
    for sub, (shape, dtype, kwargs) in zip(keys, cases):
        x = jax.random.uniform(sub, shape, dtype=jnp.float32).astype(dtype)
        out = jax.block_until_ready(sa_loss(x, **kwargs))
        ref = _sa_loss_ref(x.astype(jnp.float32))
        assert jnp.allclose(out, ref, rtol=1e-5, atol=1e-6), (shape, dtype, kwargs, out, ref)

    print("KERNEL_OK")
</pallas_src>

<mosaic_0001>
module attributes {stable_mosaic.version = 11 : i64} {
  func.func @_sa_single_kernel(%arg0: i32, %arg1: memref<1x3x2x128xf32, #tpu.memory_space<vmem>>, %arg2: memref<1x1x1xf32, #tpu.memory_space<vmem>>) attributes {dimension_semantics = [#tpu.dimension_semantics<parallel>], iteration_bounds = array<i64: 2>, scalar_prefetch = 0 : i64, scratch_operands = 0 : i64, tpu.core_type = #tpu.core_type<tc>, window_params = [{transform_indices = @transform_0, window_bounds = array<i64: 1, 3, 2, 128>}, {transform_indices = @transform_1, window_bounds = array<i64: 1, 1, 1>}]} {
    %cst = arith.constant 0.000000e+00 : f32
    %0 = vector.broadcast %cst : f32 to vector<1x1xf32>
    %c0_i32 = arith.constant 0 : i32
    %c2_i32 = arith.constant 2 : i32
    %1 = arith.muli %c0_i32, %c2_i32 : i32
    %c0 = arith.constant 0 : index
    %c0_0 = arith.constant 0 : index
    %2 = arith.index_cast %1 : i32 to index
    %c0_1 = arith.constant 0 : index
    %3 = vector.load %arg1[%c0, %c0_0, %2, %c0_1] : memref<1x3x2x128xf32, #tpu.memory_space<vmem>>, vector<1x1x2x128xf32>
    %4 = vector.shape_cast %3 : vector<1x1x2x128xf32> to vector<2x128xf32>
    %c0_2 = arith.constant 0 : index
    %c1 = arith.constant 1 : index
    %5 = arith.index_cast %1 : i32 to index
    %c0_3 = arith.constant 0 : index
    %6 = vector.load %arg1[%c0_2, %c1, %5, %c0_3] : memref<1x3x2x128xf32, #tpu.memory_space<vmem>>, vector<1x1x2x128xf32>
    %7 = vector.shape_cast %6 : vector<1x1x2x128xf32> to vector<2x128xf32>
    %c0_4 = arith.constant 0 : index
    %c2 = arith.constant 2 : index
    %8 = arith.index_cast %1 : i32 to index
    %c0_5 = arith.constant 0 : index
    %9 = vector.load %arg1[%c0_4, %c2, %8, %c0_5] : memref<1x3x2x128xf32, #tpu.memory_space<vmem>>, vector<1x1x2x128xf32>
    %10 = vector.shape_cast %9 : vector<1x1x2x128xf32> to vector<2x128xf32>
    %11 = vector.shape_cast %4 : vector<2x128xf32> to vector<1x2x128xf32>
    %cst_6 = arith.constant dense<0.000000e+00> : vector<1xf32>
    %12 = vector.multi_reduction <add>, %11, %cst_6 [1, 2] : vector<1x2x128xf32> to vector<1xf32>
    %13 = vector.shape_cast %12 : vector<1xf32> to vector<1x1x1xf32>
    %14 = vector.extract %13[0, 0, 0] : f32 from vector<1x1x1xf32>
    %15 = vector.broadcast %14 : f32 to vector<1x1xf32>
    %16 = arith.addf %0, %15 : vector<1x1xf32>
    %17 = vector.shape_cast %7 : vector<2x128xf32> to vector<1x2x128xf32>
    %cst_7 = arith.constant dense<0.000000e+00> : vector<1xf32>
    %18 = vector.multi_reduction <add>, %17, %cst_7 [1, 2] : vector<1x2x128xf32> to vector<1xf32>
    %19 = vector.shape_cast %18 : vector<1xf32> to vector<1x1x1xf32>
    %20 = vector.extract %19[0, 0, 0] : f32 from vector<1x1x1xf32>
    %21 = vector.broadcast %20 : f32 to vector<1x1xf32>
    %22 = arith.addf %0, %21 : vector<1x1xf32>
    %23 = vector.shape_cast %10 : vector<2x128xf32> to vector<1x2x128xf32>
    %cst_8 = arith.constant dense<0.000000e+00> : vector<1xf32>
    %24 = vector.multi_reduction <add>, %23, %cst_8 [1, 2] : vector<1x2x128xf32> to vector<1xf32>
    %25 = vector.shape_cast %24 : vector<1xf32> to vector<1x1x1xf32>
    %26 = vector.extract %25[0, 0, 0] : f32 from vector<1x1x1xf32>
    %27 = vector.broadcast %26 : f32 to vector<1x1xf32>
    %28 = arith.addf %0, %27 : vector<1x1xf32>
    %c1_i32 = arith.constant 1 : i32
    %cst_9 = arith.constant 3.906250e-03 : f32
    %29 = vector.broadcast %cst_9 : f32 to vector<1x1xf32>
    %30 = arith.mulf %16, %29 : vector<1x1xf32>
    %cst_10 = arith.constant 3.906250e-03 : f32
    %31 = vector.broadcast %cst_10 : f32 to vector<1x1xf32>
    %32 = arith.mulf %22, %31 : vector<1x1xf32>
    %cst_11 = arith.constant 3.906250e-03 : f32
    %33 = vector.broadcast %cst_11 : f32 to vector<1x1xf32>
    %34 = arith.mulf %28, %33 : vector<1x1xf32>
    %c0_i32_12 = arith.constant 0 : i32
    %c2_i32_13 = arith.constant 2 : i32
    %35 = arith.muli %c0_i32_12, %c2_i32_13 : i32
    %c0_14 = arith.constant 0 : index
    %c0_15 = arith.constant 0 : index
    %36 = arith.index_cast %35 : i32 to index
    %c0_16 = arith.constant 0 : index
    %37 = vector.load %arg1[%c0_14, %c0_15, %36, %c0_16] : memref<1x3x2x128xf32, #tpu.memory_space<vmem>>, vector<1x1x2x128xf32>
    %38 = vector.shape_cast %37 : vector<1x1x2x128xf32> to vector<2x128xf32>
    %c0_17 = arith.constant 0 : index
    %c1_18 = arith.constant 1 : index
    %39 = arith.index_cast %35 : i32 to index
    %c0_19 = arith.constant 0 : index
    %40 = vector.load %arg1[%c0_17, %c1_18, %39, %c0_19] : memref<1x3x2x128xf32, #tpu.memory_space<vmem>>, vector<1x1x2x128xf32>
    %41 = vector.shape_cast %40 : vector<1x1x2x128xf32> to vector<2x128xf32>
    %c0_20 = arith.constant 0 : index
    %c2_21 = arith.constant 2 : index
    %42 = arith.index_cast %35 : i32 to index
    %c0_22 = arith.constant 0 : index
    %43 = vector.load %arg1[%c0_20, %c2_21, %42, %c0_22] : memref<1x3x2x128xf32, #tpu.memory_space<vmem>>, vector<1x1x2x128xf32>
    %44 = vector.shape_cast %43 : vector<1x1x2x128xf32> to vector<2x128xf32>
    %45 = vector.broadcast %30 : vector<1x1xf32> to vector<2x128xf32>
    %46 = arith.subf %38, %45 : vector<2x128xf32>
    %47 = vector.broadcast %32 : vector<1x1xf32> to vector<2x128xf32>
    %48 = arith.subf %41, %47 : vector<2x128xf32>
    %49 = vector.broadcast %34 : vector<1x1xf32> to vector<2x128xf32>
    %50 = arith.subf %44, %49 : vector<2x128xf32>
    %51 = arith.mulf %46, %46 : vector<2x128xf32>
    %52 = arith.mulf %48, %48 : vector<2x128xf32>
    %53 = arith.addf %51, %52 : vector<2x128xf32>
    %54 = arith.mulf %50, %50 : vector<2x128xf32>
    %55 = arith.addf %53, %54 : vector<2x128xf32>
    %56 = math.sqrt %55 : vector<2x128xf32>
    %57 = vector.shape_cast %56 : vector<2x128xf32> to vector<1x2x128xf32>
    %cst_23 = arith.constant dense<0.000000e+00> : vector<1xf32>
    %58 = vector.multi_reduction <add>, %57, %cst_23 [1, 2] : vector<1x2x128xf32> to vector<1xf32>
    %59 = vector.shape_cast %58 : vector<1xf32> to vector<1x1x1xf32>
    %60 = vector.extract %59[0, 0, 0] : f32 from vector<1x1x1xf32>
    %61 = vector.broadcast %60 : f32 to vector<1x1xf32>
    %62 = arith.addf %0, %61 : vector<1x1xf32>
    %c1_i32_24 = arith.constant 1 : i32
    %63 = vector.shape_cast %62 : vector<1x1xf32> to vector<1x1x1xf32>
    %c0_25 = arith.constant 0 : index
    %c0_26 = arith.constant 0 : index
    %c0_27 = arith.constant 0 : index
    %64 = vector.load %arg2[%c0_25, %c0_26, %c0_27] : memref<1x1x1xf32, #tpu.memory_space<vmem>>, vector<1x1x1xf32>
    tpu.vector_store %arg2[%c0_25, %c0_26, %c0_27], %63 {strides = array<i32>} : memref<1x1x1xf32, #tpu.memory_space<vmem>>, vector<1x1x1xf32>,
    return
  }
  func.func @transform_0(%arg0: i32) -> (i32, i32, i32, i32) {
    %c0_i32 = arith.constant 0 : i32
    %c0_i32_0 = arith.constant 0 : i32
    %c0_i32_1 = arith.constant 0 : i32
    %c0_i32_2 = arith.constant 0 : i32
    return %arg0, %c0_i32, %c0_i32_0, %c0_i32_1 : i32, i32, i32, i32
  }
  func.func @transform_1(%arg0: i32) -> (i32, i32, i32) {
    %c0_i32 = arith.constant 0 : i32
    %c0_i32_0 = arith.constant 0 : i32
    %c0_i32_1 = arith.constant 0 : i32
    return %arg0, %c0_i32, %c0_i32_0 : i32, i32, i32
  }
}

</mosaic_0001>

<llo_original>
// kernel: tpu_custom_call.1
$region0: #{tpu_custom_call.1}
  #allocation0 [shape = 'u32[]', space=smem, size = 0x4, offset = 0x4, fixed_abs, tag = 'smem constant byte address 0x4 - core index']
  #allocation1 [shape = 'u32[144,128]{1,0:T(1,128)}', space=vmem, size = 0x12000, scoped, tag = 'internal scratch']
  %s0 = inlined_call_operand.hbm [shape: f32[2,3,2,128], index: 0, kind: input, shape index: {}]
  %s1 = inlined_call_operand.vmem [shape: f32[2,1,1], index: 1, kind: output, shape index: {}]
  %s2 = sld [smem:[#allocation0]]
  $region41: #{tpu_custom_call.1} parent=0
    _
  %s4 = ssub.s32 1, %s2
  %s5 = scalar_select 0, %s4, %s2
  $region1: #{tpu_custom_call.1} parent=0
    #allocation2 [shape = 'u8[6144]{0}', space=vmem, size = 0x1800, scoped, tag = 'input window, operand 0']
    #allocation3 [shape = 's32[2]{0}', space=sflag, size = 0x8, scoped, tag = 'scoped memory for tpu_custom_call.1']
    %6 = vsyncpa [#allocation3], 0
    %s7 = scalar_lea.sflag [#allocation3], 1
    %8 = vsyncpa %s7, 0
    loop: start=0, step=1, limit=4
    $region2: #{tpu_custom_call.1} parent=1 // loop_pre_header
      _
    $region3: #{tpu_custom_call.1} parent=1 // loop_header
      %s10 = sphi 0, %s14
      %p11 = scmp.ge.s32.totalorder %s10, 4
      %s20 = sphi 0, %s22
      %s23 = sphi 0, %s20
      %s24 = sphi 0, %s23
      %s40 = sphi 0, %s24
      %s46 = sphi 0, %s48
      %s49 = sphi 0, %s46
      %s50 = sphi 0, %s49
      %s66 = sphi 0, %s50
    $region4: #{tpu_custom_call.1} parent=1 // loop_header_branch
      %13 = sbr.rel (%p11) target = $region8
    $region5: #{tpu_custom_call.1} parent=1 // loop_body
      %s15 = ssub.s32 %s10, 1
      %s16 = ssub.s32 %s10, 2
      %s17 = sadd.s32 %s10, 1
      %s18 = ssub.s32 %s10, %s17
      %p19 = scmp.eq.s32.totalorder %s18, 0
      %s21 = sadd.s32 %s20, 1
      %s22 = scalar_select %p19, %s20, %s21
      %p25 = pneg %p19
      %p26 = scmp.eq.s32.totalorder %s10, 1
      %p27 = por %p25, %p26
      %p28 = scmp.ne.s32.totalorder %s20, %s23
      %p29 = scmp.eq.s32.totalorder %s10, 0
      %p30 = por %p28, %p29
      %p31 = scmp.ne.s32.totalorder %s20, %s23
      %p32 = scmp.eq.s32.totalorder %s15, 1
      %p33 = por %p31, %p32
      %p34 = scmp.ne.s32.totalorder %s23, %s24
      %p35 = scmp.eq.s32.totalorder %s15, 0
      %p36 = por %p34, %p35
      %p37 = scmp.ne.s32.totalorder %s23, %s24
      %p38 = scmp.eq.s32.totalorder %s16, 1
      %p39 = por %p37, %p38
      %p41 = scmp.ne.s32.totalorder %s24, %s40
      %p42 = scmp.eq.s32.totalorder %s16, 0
      %p43 = por %p41, %p42
      %s44 = ssub.s32 %s10, %s17
      %p45 = scmp.eq.s32.totalorder %s44, 0
      %s47 = sadd.s32 %s46, 1
      %s48 = scalar_select %p45, %s46, %s47
      %p51 = pneg %p45
      %p52 = scmp.eq.s32.totalorder %s10, 1
      %p53 = por %p51, %p52
      %p54 = scmp.ne.s32.totalorder %s46, %s49
      %p55 = scmp.eq.s32.totalorder %s10, 0
      %p56 = por %p54, %p55
      %p57 = scmp.ne.s32.totalorder %s46, %s49
      %p58 = scmp.eq.s32.totalorder %s15, 1
      %p59 = por %p57, %p58
      %p60 = scmp.ne.s32.totalorder %s49, %s50
      %p61 = scmp.eq.s32.totalorder %s15, 0
      %p62 = por %p60, %p61
      %p63 = scmp.ne.s32.totalorder %s49, %s50
      %p64 = scmp.eq.s32.totalorder %s16, 1
      %p65 = por %p63, %p64
      %p67 = scmp.ne.s32.totalorder %s50, %s66
      %p68 = scmp.eq.s32.totalorder %s16, 0
      %p69 = por %p67, %p68
      %p70 = scmp.le.s32.totalorder 1, %s10
      %p71 = scmp.lt.s32.totalorder %s10, 3
      %p72 = pnand %p70, %p71
      %p73 = pneg %p72
      // Predicated region
      $region9: #{tpu_custom_call.1} parent=5 // pred_check
        _
      $region10: #{tpu_custom_call.1} parent=5 // pred_check_branch
        %75 = sbr.rel (%p72) target = $region12
      $region11: #{tpu_custom_call.1} parent=5 // pred_region
        %s76 = ssub.s32 %s10, 1
      $region12: #{tpu_custom_call.1} parent=5 // pred_fallthru
        _
      %p77 = scmp.lt.s32.totalorder %s10, 2
      // Predicated region
      $region13: #{tpu_custom_call.1} parent=5 // pred_check
        %p78 = pneg %p77
      $region14: #{tpu_custom_call.1} parent=5 // pred_check_branch
        %80 = sbr.rel (%p78) target = $region16
      $region15: #{tpu_custom_call.1} parent=5 // pred_region
        // Predicated region
        $region17: #{tpu_custom_call.1} parent=15 // pred_check
          %p81 = pneg %p30
        $region18: #{tpu_custom_call.1} parent=15 // pred_check_branch
          %83 = sbr.rel (%p81) target = $region20
        $region19: #{tpu_custom_call.1} parent=15 // pred_region
          %s84 = sand.u32 %s20, 1
          %s85 = scalar_lea.sflag [#allocation3], %s84
          %s86 = sand.u32 %s20, 1
          %s87 = smul.addr %s86, 6
          %s88 = scalar_lea.vmem [#allocation2], %s87
          %s90 = ssub.s32 96, 96
          %91 = vsyncadd %s85, %s90
          %s92 = smul.addr %s10, 3
          %s93 = smul.addr %s92, 32
          %s94 = scalar_lea.hbm %s0, %s93
          %s95 = sshll.u32 %s88, 4
          %s96 = int_to_ptr.vmem [resolvable:$true] %s95
          %101 = dma.hbm_to_vmem [thread:$0]  %s94, 96, %s96, %s85, 32, 32, 2
        $region20: #{tpu_custom_call.1} parent=15 // pred_fallthru
          _
      $region16: #{tpu_custom_call.1} parent=5 // pred_fallthru
        _
      %p102 = scmp.le.s32.totalorder 1, %s10
      %p103 = scmp.lt.s32.totalorder %s10, 3
      %p104 = pnand %p102, %p103
      %p105 = pneg %p104
      // Predicated region
      $region21: #{tpu_custom_call.1} parent=5 // pred_check
        _
      $region22: #{tpu_custom_call.1} parent=5 // pred_check_branch
        %107 = sbr.rel (%p104) target = $region24
      $region23: #{tpu_custom_call.1} parent=5 // pred_region
        %s108 = ssub.s32 %s10, 1
        %s109 = sand.u32 %s23, 1
        %s110 = scalar_lea.sflag [#allocation3], %s109
        %s111 = sand.u32 %s23, 1
        %s112 = smul.addr %s111, 6
        %s113 = scalar_lea.vmem [#allocation2], %s112
        // Predicated region
        $region25: #{tpu_custom_call.1} parent=23 // pred_check
          %p114 = pneg %p36
        $region26: #{tpu_custom_call.1} parent=23 // pred_check_branch
          %116 = sbr.rel (%p114) target = $region28
        $region27: #{tpu_custom_call.1} parent=23 // pred_region
          %117 = dma.done %s110, 96
        $region28: #{tpu_custom_call.1} parent=23 // pred_fallthru
          _
        %s118 = sand.u32 %s23, 1
        %s119 = scalar_lea.sflag [#allocation3], %s118
        %s120 = sand.u32 %s23, 1
        %s121 = smul.addr %s120, 6
        %s122 = scalar_lea.vmem [#allocation2], %s121
        %p123 = pneg %p36
        %p124 = pneg %p33
        %p125 = pneg %p62
        %p126 = pneg %p59
        %p127 = scmp.lt.s32.totalorder %s15, 1
        %s128 = scalar_select %p127, %s15, 1
        %s129 = scalar_lea.vmem %s1, %s128
        %p130 = scmp.lt.s32.totalorder %s15, 1
        %s131 = scalar_select %p130, %s15, 1
        %s132 = scalar_lea.vmem %s1, %s131
        %v133 = vld [vmem:[%s113] sm:$0x3]
        %s134 = scalar_lea.vmem %s113, 2 [#allocation2]
        %v135 = vld [vmem:[%s134] sm:$0x3]
        %s136 = scalar_lea.vmem %s113, 4 [#allocation2]
        %v137 = vld [vmem:[%s136] sm:$0x3]
        %vm138 = vcmask 1041408
        %v139 = vsel %vm138, %v133, 0.0
        %140 = vadd.xlane.f32.xlu0 %v139
        %v141 = vpop.xlane.xlu0 %140
        %v142 = vrot.slane %v141, 4
        %v143 = vadd.f32 %v141, %v142
        %v144 = vrot.slane %v143, 2
        %v145 = vadd.f32 %v143, %v144
        %v146 = vrot.slane %v145, 1
        %v147 = vadd.f32 %v145, %v146
        %s148 = vtos %v147
        %v149 = vstv %s148
        %v150 = vadd.f32 %v149, 0.0
        %v151 = vsel %vm138, %v135, 0.0
        %152 = vadd.xlane.f32.xlu0 %v151
        %v153 = vpop.xlane.xlu0 %152
        %v154 = vrot.slane %v153, 4
        %v155 = vadd.f32 %v153, %v154
        %v156 = vrot.slane %v155, 2
        %v157 = vadd.f32 %v155, %v156
        %v158 = vrot.slane %v157, 1
        %v159 = vadd.f32 %v157, %v158
        %s160 = vtos %v159
        %v161 = vstv %s160
        %v162 = vadd.f32 %v161, 0.0
        %v163 = vsel %vm138, %v137, 0.0
        %164 = vadd.xlane.f32.xlu0 %v163
        %v165 = vpop.xlane.xlu0 %164
        %v166 = vrot.slane %v165, 4
        %v167 = vadd.f32 %v165, %v166
        %v168 = vrot.slane %v167, 2
        %v169 = vadd.f32 %v167, %v168
        %v170 = vrot.slane %v169, 1
        %v171 = vadd.f32 %v169, %v170
        %s172 = vtos %v171
        %v173 = vstv %s172
        %v174 = vadd.f32 %v173, 0.0
        %v175 = vmul.f32 %v150, 0.00390625
        %v176 = vmul.f32 %v162, 0.00390625
        %v177 = vmul.f32 %v174, 0.00390625
        %v178 = vsub.f32 %v133, %v175
        %v179 = vsub.f32 %v135, %v176
        %v180 = vsub.f32 %v137, %v177
        %v181 = vmul.f32 %v178, %v178
        %v182 = vmul.f32 %v179, %v179
        %v183 = vadd.f32 %v181, %v182
        %v184 = vmul.f32 %v180, %v180
        %v185 = vadd.f32 %v183, %v184
        %v186 = vrsqrt.pop %v185
        %v187 = vmul.f32 %v185, %v186
        %vm188 = vcmp.eq.f32.partialorder %v185, inf
        %v189 = vsel %vm188, %v185, %v187
        %vm190 = vcmp.eq.f32.partialorder %v185, 0.0
        %v191 = vand.u32 %v185, 2147483648
        %v192 = vsel %vm190, %v191, %v189
        %v193 = vsel %vm138, %v192, 0.0
        %194 = vadd.xlane.f32.xlu0 %v193
        %v195 = vpop.xlane.xlu0 %194
        %v196 = vrot.slane %v195, 4
        %v197 = vadd.f32 %v195, %v196
        %v198 = vrot.slane %v197, 2
        %v199 = vadd.f32 %v197, %v198
        %v200 = vrot.slane %v199, 1
        %v201 = vadd.f32 %v199, %v200
        %s202 = vtos %v201
        %v203 = vstv %s202
        %v204 = vadd.f32 %v203, 0.0
        %vm205 = vcmask 0
        %206 = vst.msk [vmem:[%s132] sm:$0x1] %vm205, %v204
        %p207 = scmp.lt.s32.totalorder %s15, 1
        %s208 = scalar_select %p207, %s15, 1
        %s209 = scalar_lea.vmem %s1, %s208
        // Predicated region
        $region29: #{tpu_custom_call.1} parent=23 // pred_check
          %p210 = pneg %p59
        $region30: #{tpu_custom_call.1} parent=23 // pred_check_branch
          %212 = sbr.rel (%p210) target = $region32
        $region31: #{tpu_custom_call.1} parent=23 // pred_region
          _
        $region32: #{tpu_custom_call.1} parent=23 // pred_fallthru
          _
      $region24: #{tpu_custom_call.1} parent=5 // pred_fallthru
        _
      %p213 = scmp.le.s32.totalorder 2, %s10
      // Predicated region
      $region33: #{tpu_custom_call.1} parent=5 // pred_check
        %p214 = pneg %p213
      $region34: #{tpu_custom_call.1} parent=5 // pred_check_branch
        %216 = sbr.rel (%p214) target = $region36
      $region35: #{tpu_custom_call.1} parent=5 // pred_region
        %s217 = ssub.s32 %s10, 2
        // Predicated region
        $region37: #{tpu_custom_call.1} parent=35 // pred_check
          %p218 = pneg %p65
        $region38: #{tpu_custom_call.1} parent=35 // pred_check_branch
          %220 = sbr.rel (%p218) target = $region40
        $region39: #{tpu_custom_call.1} parent=35 // pred_region
          %p221 = scmp.lt.s32.totalorder %s16, 1
          %s222 = scalar_select %p221, %s16, 1
          %s223 = scalar_lea.vmem %s1, %s222
        $region40: #{tpu_custom_call.1} parent=35 // pred_fallthru
          _
      $region36: #{tpu_custom_call.1} parent=5 // pred_fallthru
        _
    $region6: #{tpu_custom_call.1} parent=1 // loop_footer
      %s14 = sadd.s32 1, %s10
    $region7: #{tpu_custom_call.1} parent=1 // loop_footer_branch
      %9 = sbr.rel target = $region3
    $region8: #{tpu_custom_call.1} parent=1 // loop_exit
      _
    %224 = vsyncpa [#allocation3], 1
    %s225 = scalar_lea.sflag [#allocation3], 1
    %226 = vsyncpa %s225, 1

</llo_original>
